<compile_context>
chip_gen: v5e
topology: v5e:2x2
jax: 0.10.0
libtpu: 0.0.40
codegen_flags: <defaults>
</compile_context>

<pallas_src>
import math
import functools

import jax
import jax.numpy as jnp
from jax import lax
from jax.experimental import pallas as pl
from jax.experimental.pallas import tpu as pltpu

_SQRT_2_OVER_PI = math.sqrt(2.0 / math.pi)
_GELU_CUBIC = 0.044715

_VMEM_LIMIT_BYTES = 48 * 1024 * 1024      # safe on v5e/v6e (128 MiB) and v7x (64 MiB/TC)
_TARGET_BLOCK_BYTES = 2 * 1024 * 1024     # ~2 MiB of x per grid step


def _round_up(v, m):
    return ((v + m - 1) // m) * m


def _sublane_multiple(dtype):
    itemsize = jnp.dtype(dtype).itemsize
    return {4: 8, 2: 16, 1: 32}.get(itemsize, 8)


def _pick_tm(n_rows, d, dtype):
    """Row-tile size: ~_TARGET_BLOCK_BYTES of input per block, dtype-aligned."""
    mult = _sublane_multiple(dtype)
    itemsize = jnp.dtype(dtype).itemsize
    tm = max(mult, _TARGET_BLOCK_BYTES // max(1, d * itemsize))
    tm = max(mult, (tm // mult) * mult)
    # Keep >= 2 row blocks when there are enough rows, so the "parallel" row
    # axis can shard across both TensorCores on v7x (avoid one giant block).
    if n_rows >= 2 * mult:
        tm = min(tm, _round_up(pl.cdiv(n_rows, 2), mult))
    # Never larger than the (sublane-rounded) row count.
    tm = min(tm, _round_up(n_rows, mult))
    return tm


def _ln_gelu_kernel(x_ref, g_ref, b_ref, o_ref, *, eps, d):
    # x_ref: (TM, D) tile of rows; g_ref/b_ref: (1, D) VMEM-resident params.
    x = x_ref[...].astype(jnp.float32)

    # Two independent row reductions (overlap on the XLU with the GELU tail).
    d_inv = 1.0 / float(d)
    s1 = jnp.sum(x, axis=-1, keepdims=True)
    s2 = jnp.sum(x * x, axis=-1, keepdims=True)
    mean = s1 * d_inv
    var = jnp.maximum(s2 * d_inv - mean * mean, 0.0)   # clamp f32 cancellation
    inv = lax.rsqrt(var + eps)

    y = (x - mean) * inv * g_ref[...].astype(jnp.float32) + b_ref[...].astype(jnp.float32)

    # NewGELU (tanh approximation) — tanh runs on the EUP slot.
    inner = _SQRT_2_OVER_PI * (y + _GELU_CUBIC * (y * y * y))
    out = 0.5 * y * (1.0 + jnp.tanh(inner))

    o_ref[...] = out.astype(o_ref.dtype)


def layer_norm_gelu(x, gamma, beta, *, eps=1e-5):
    """Fused LayerNorm(dim) + NewGELU.

    x:     [..., D]
    gamma: [D]  (LayerNorm weight)
    beta:  [D]  (LayerNorm bias)
    """
    orig_shape = x.shape
    D = orig_shape[-1]
    xf = x.reshape(-1, D)
    N = xf.shape[0]

    TM = _pick_tm(N, D, x.dtype)
    n_blocks = pl.cdiv(N, TM)   # ragged tail handled by Pallas (no pad/slice)

    g2 = gamma.reshape(1, D)
    b2 = beta.reshape(1, D)

    kernel = functools.partial(_ln_gelu_kernel, eps=float(eps), d=D)
    out = pl.pallas_call(
        kernel,
        out_shape=jax.ShapeDtypeStruct((N, D), x.dtype),
        grid=(n_blocks,),
        in_specs=[
            pl.BlockSpec((TM, D), lambda i: (i, 0)),   # row tile of x
            pl.BlockSpec((1, D), lambda i: (0, 0)),    # gamma (VMEM-resident)
            pl.BlockSpec((1, D), lambda i: (0, 0)),    # beta  (VMEM-resident)
        ],
        out_specs=pl.BlockSpec((TM, D), lambda i: (i, 0)),
        compiler_params=pltpu.CompilerParams(
            dimension_semantics=("parallel",),         # shards rows across TCs (v7x)
            vmem_limit_bytes=_VMEM_LIMIT_BYTES,
        ),
    )(xf, g2, b2)

    return out.reshape(orig_shape)


def _reference(x, gamma, beta, eps=1e-5):
    x = x.astype(jnp.float32)
    mean = jnp.mean(x, axis=-1, keepdims=True)
    var = jnp.mean((x - mean) ** 2, axis=-1, keepdims=True)
    y = (x - mean) / jnp.sqrt(var + eps) * gamma + beta
    return 0.5 * y * (1.0 + jnp.tanh(_SQRT_2_OVER_PI * (y + _GELU_CUBIC * y ** 3)))


if __name__ == "__main__":
    B, S, D = 2, 8, 128  # batch, sequence, hidden (LayerNorm dim)

    key = jax.random.PRNGKey(0)
    kx, kg, kb = jax.random.split(key, 3)

    x = jax.random.normal(kx, (B, S, D), dtype=jnp.float32)
    # PyTorch LayerNorm inits weight=1, bias=0; perturb slightly so the affine
    # path is actually exercised by the check.
    gamma = 1.0 + 0.1 * jax.random.normal(kg, (D,), dtype=jnp.float32)
    beta = 0.1 * jax.random.normal(kb, (D,), dtype=jnp.float32)

    out = layer_norm_gelu(x, gamma, beta)
    jax.block_until_ready(out)

    ref = _reference(x, gamma, beta)
    assert out.shape == x.shape
    assert jnp.allclose(out, ref, atol=1e-4, rtol=1e-4), "LayerNormGELU mismatch"

    print("KERNEL_OK")
</pallas_src>

<mosaic_0001>
module attributes {stable_mosaic.version = 11 : i64} {
  func.func @_ln_gelu_kernel(%arg0: i32, %arg1: memref<8x128xf32, #tpu.memory_space<vmem>>, %arg2: memref<1x128xf32, #tpu.memory_space<vmem>>, %arg3: memref<1x128xf32, #tpu.memory_space<vmem>>, %arg4: memref<8x128xf32, #tpu.memory_space<vmem>>) attributes {dimension_semantics = [#tpu.dimension_semantics<parallel>], iteration_bounds = array<i64: 2>, scalar_prefetch = 0 : i64, scratch_operands = 0 : i64, tpu.core_type = #tpu.core_type<tc>, window_params = [{transform_indices = @transform_0, window_bounds = array<i64: 8, 128>}, {pipeline_mode = #tpu.pipeline_mode<synchronous>, transform_indices = @transform_1, window_bounds = array<i64: 1, 128>}, {pipeline_mode = #tpu.pipeline_mode<synchronous>, transform_indices = @transform_2, window_bounds = array<i64: 1, 128>}, {transform_indices = @transform_3, window_bounds = array<i64: 8, 128>}]} {
    %c0 = arith.constant 0 : index
    %c0_0 = arith.constant 0 : index
    %0 = vector.load %arg1[%c0, %c0_0] : memref<8x128xf32, #tpu.memory_space<vmem>>, vector<8x128xf32>
    %cst = arith.constant dense<0.000000e+00> : vector<8xf32>
    %1 = vector.multi_reduction <add>, %0, %cst [1] : vector<8x128xf32> to vector<8xf32>
    %2 = vector.shape_cast %1 : vector<8xf32> to vector<8x1xf32>
    %3 = arith.mulf %0, %0 : vector<8x128xf32>
    %cst_1 = arith.constant dense<0.000000e+00> : vector<8xf32>
    %4 = vector.multi_reduction <add>, %3, %cst_1 [1] : vector<8x128xf32> to vector<8xf32>
    %5 = vector.shape_cast %4 : vector<8xf32> to vector<8x1xf32>
    %cst_2 = arith.constant 7.812500e-03 : f32
    %6 = vector.broadcast %cst_2 : f32 to vector<8x1xf32>
    %7 = arith.mulf %2, %6 : vector<8x1xf32>
    %cst_3 = arith.constant 7.812500e-03 : f32
    %8 = vector.broadcast %cst_3 : f32 to vector<8x1xf32>
    %9 = arith.mulf %5, %8 : vector<8x1xf32>
    %10 = arith.mulf %7, %7 : vector<8x1xf32>
    %11 = arith.subf %9, %10 : vector<8x1xf32>
    %cst_4 = arith.constant 0.000000e+00 : f32
    %12 = vector.broadcast %cst_4 : f32 to vector<8x1xf32>
    %13 = arith.maximumf %11, %12 : vector<8x1xf32>
    %cst_5 = arith.constant 9.99999974E-6 : f32
    %14 = vector.broadcast %cst_5 : f32 to vector<8x1xf32>
    %15 = arith.addf %13, %14 : vector<8x1xf32>
    %16 = math.rsqrt %15 : vector<8x1xf32>
    %17 = vector.broadcast %7 : vector<8x1xf32> to vector<8x128xf32>
    %18 = arith.subf %0, %17 : vector<8x128xf32>
    %19 = vector.broadcast %16 : vector<8x1xf32> to vector<8x128xf32>
    %20 = arith.mulf %18, %19 : vector<8x128xf32>
    %c0_6 = arith.constant 0 : index
    %c0_7 = arith.constant 0 : index
    %21 = vector.load %arg2[%c0_6, %c0_7] : memref<1x128xf32, #tpu.memory_space<vmem>>, vector<1x128xf32>
    %22 = vector.broadcast %21 : vector<1x128xf32> to vector<8x128xf32>
    %23 = arith.mulf %20, %22 : vector<8x128xf32>
    %c0_8 = arith.constant 0 : index
    %c0_9 = arith.constant 0 : index
    %24 = vector.load %arg3[%c0_8, %c0_9] : memref<1x128xf32, #tpu.memory_space<vmem>>, vector<1x128xf32>
    %25 = vector.broadcast %24 : vector<1x128xf32> to vector<8x128xf32>
    %26 = arith.addf %23, %25 : vector<8x128xf32>
    %27 = arith.mulf %26, %26 : vector<8x128xf32>
    %28 = arith.mulf %27, %26 : vector<8x128xf32>
    %cst_10 = arith.constant 4.471500e-02 : f32
    %29 = vector.broadcast %cst_10 : f32 to vector<8x128xf32>
    %30 = arith.mulf %29, %28 : vector<8x128xf32>
    %31 = arith.addf %26, %30 : vector<8x128xf32>
    %cst_11 = arith.constant 0.797884583 : f32
    %32 = vector.broadcast %cst_11 : f32 to vector<8x128xf32>
    %33 = arith.mulf %32, %31 : vector<8x128xf32>
    %cst_12 = arith.constant 5.000000e-01 : f32
    %34 = vector.broadcast %cst_12 : f32 to vector<8x128xf32>
    %35 = arith.mulf %34, %26 : vector<8x128xf32>
    %36 = math.tanh %33 : vector<8x128xf32>
    %cst_13 = arith.constant 1.000000e+00 : f32
    %37 = vector.broadcast %cst_13 : f32 to vector<8x128xf32>
    %38 = arith.addf %37, %36 : vector<8x128xf32>
    %39 = arith.mulf %35, %38 : vector<8x128xf32>
    %c0_14 = arith.constant 0 : index
    %c0_15 = arith.constant 0 : index
    %40 = vector.load %arg4[%c0_14, %c0_15] : memref<8x128xf32, #tpu.memory_space<vmem>>, vector<8x128xf32>
    tpu.vector_store %arg4[%c0_14, %c0_15], %39 {strides = array<i32>} : memref<8x128xf32, #tpu.memory_space<vmem>>, vector<8x128xf32>,
    return
  }
  func.func @transform_0(%arg0: i32) -> (i32, i32) {
    %c0_i32 = arith.constant 0 : i32
    %c0_i32_0 = arith.constant 0 : i32
    return %arg0, %c0_i32 : i32, i32
  }
  func.func @transform_1(%arg0: i32) -> (i32, i32) {
    %c0_i32 = arith.constant 0 : i32
    %c0_i32_0 = arith.constant 0 : i32
    %c0_i32_1 = arith.constant 0 : i32
    return %c0_i32, %c0_i32_0 : i32, i32
  }
  func.func @transform_2(%arg0: i32) -> (i32, i32) {
    %c0_i32 = arith.constant 0 : i32
    %c0_i32_0 = arith.constant 0 : i32
    %c0_i32_1 = arith.constant 0 : i32
    return %c0_i32, %c0_i32_0 : i32, i32
  }
  func.func @transform_3(%arg0: i32) -> (i32, i32) {
    %c0_i32 = arith.constant 0 : i32
    %c0_i32_0 = arith.constant 0 : i32
    return %arg0, %c0_i32 : i32, i32
  }
}

</mosaic_0001>

<llo_original>
// kernel: tpu_custom_call.1
$region0: #{tpu_custom_call.1}
  #allocation0 [shape = 'u32[]', space=smem, size = 0x4, offset = 0x4, fixed_abs, tag = 'smem constant byte address 0x4 - core index']
  #allocation1 [shape = 'u32[72,128]{1,0:T(1,128)}', space=vmem, size = 0x9000, scoped, tag = 'internal scratch']
  %s0 = inlined_call_operand.hbm [shape: f32[16,128], index: 0, kind: input, shape index: {}]
  %s1 = inlined_call_operand.hbm [shape: f32[1,128], index: 1, kind: input, shape index: {}]
  %s2 = inlined_call_operand.vmem [shape: f32[1,128], index: 2, kind: input, shape index: {}]
  %s3 = inlined_call_operand.hbm [shape: f32[16,128], index: 3, kind: output, shape index: {}]
  %s4 = sld [smem:[#allocation0]]
  $region53: #{tpu_custom_call.1} parent=0
    _
  %s6 = ssub.s32 1, %s4
  %s7 = scalar_select 0, %s6, %s4
  $region1: #{tpu_custom_call.1} parent=0
    #allocation2 [shape = 'u8[8192]{0}', space=vmem, size = 0x2000, scoped, tag = 'input window, operand 0']
    #allocation3 [shape = 's32[2]{0}', space=sflag, size = 0x8, scoped, tag = 'scoped memory for tpu_custom_call.1']
    #allocation4 [shape = 's32[2]{0}', space=sflag, size = 0x8, scoped, tag = 'scoped memory for tpu_custom_call.1']
    #allocation5 [shape = 'u8[512]{0}', space=vmem, size = 0x400, scoped, tag = 'input window, operand 1, single buffered']
    #allocation6 [shape = 's32[1]{0}', space=sflag, size = 0x4, scoped, tag = 'scoped memory for tpu_custom_call.1']
    #allocation7 [shape = 'u8[8192]{0}', space=vmem, size = 0x2000, scoped, tag = 'output window, operand 0']
    %8 = vsyncpa [#allocation3], 0
    %s9 = scalar_lea.sflag [#allocation3], 1
    %10 = vsyncpa %s9, 0
    %11 = vsyncpa [#allocation6], 0
    %12 = vsyncpa [#allocation4], 0
    %s13 = scalar_lea.sflag [#allocation4], 1
    %14 = vsyncpa %s13, 0
    loop: start=0, step=1, limit=4
    $region2: #{tpu_custom_call.1} parent=1 // loop_pre_header
      _
    $region3: #{tpu_custom_call.1} parent=1 // loop_header
      %s16 = sphi 0, %s20
      %p17 = scmp.ge.s32.totalorder %s16, 4
      %s26 = sphi 0, %s28
      %s29 = sphi 0, %s26
      %s30 = sphi 0, %s29
      %s46 = sphi 0, %s30
      %s50 = sphi 0, %s50
      %s52 = sphi 0, %s50
      %s53 = sphi 0, %s52
      %s67 = sphi 0, %s53
      %s71 = sphi 0, %s71
      %s73 = sphi 0, %s71
      %s74 = sphi 0, %s73
      %s88 = sphi 0, %s74
      %s94 = sphi 0, %s96
      %s97 = sphi 0, %s94
      %s98 = sphi 0, %s97
      %s114 = sphi 0, %s98
    $region4: #{tpu_custom_call.1} parent=1 // loop_header_branch
      %19 = sbr.rel (%p17) target = $region8
    $region5: #{tpu_custom_call.1} parent=1 // loop_body
      %s21 = ssub.s32 %s16, 1
      %s22 = ssub.s32 %s16, 2
      %s23 = sadd.s32 %s16, 1
      %s24 = ssub.s32 %s16, %s23
      %p25 = scmp.eq.s32.totalorder %s24, 0
      %s27 = sadd.s32 %s26, 1
      %s28 = scalar_select %p25, %s26, %s27
      %p31 = pneg %p25
      %p32 = scmp.eq.s32.totalorder %s16, 1
      %p33 = por %p31, %p32
      %p34 = scmp.ne.s32.totalorder %s26, %s29
      %p35 = scmp.eq.s32.totalorder %s16, 0
      %p36 = por %p34, %p35
      %p37 = scmp.ne.s32.totalorder %s26, %s29
      %p38 = scmp.eq.s32.totalorder %s21, 1
      %p39 = por %p37, %p38
      %p40 = scmp.ne.s32.totalorder %s29, %s30
      %p41 = scmp.eq.s32.totalorder %s21, 0
      %p42 = por %p40, %p41
      %p43 = scmp.ne.s32.totalorder %s29, %s30
      %p44 = scmp.eq.s32.totalorder %s22, 1
      %p45 = por %p43, %p44
      %p47 = scmp.ne.s32.totalorder %s30, %s46
      %p48 = scmp.eq.s32.totalorder %s22, 0
      %p49 = por %p47, %p48
      %s51 = sadd.s32 %s50, 1
      %p54 = scmp.eq.s32.totalorder %s16, 1
      %p55 = scmp.ne.s32.totalorder %s50, %s52
      %p56 = scmp.eq.s32.totalorder %s16, 0
      %p57 = por %p55, %p56
      %p58 = scmp.ne.s32.totalorder %s50, %s52
      %p59 = scmp.eq.s32.totalorder %s21, 1
      %p60 = por %p58, %p59
      %p61 = scmp.ne.s32.totalorder %s52, %s53
      %p62 = scmp.eq.s32.totalorder %s21, 0
      %p63 = por %p61, %p62
      %p64 = scmp.ne.s32.totalorder %s52, %s53
      %p65 = scmp.eq.s32.totalorder %s22, 1
      %p66 = por %p64, %p65
      %p68 = scmp.ne.s32.totalorder %s53, %s67
      %p69 = scmp.eq.s32.totalorder %s22, 0
      %p70 = por %p68, %p69
      %s72 = sadd.s32 %s71, 1
      %p75 = scmp.eq.s32.totalorder %s16, 1
      %p76 = scmp.ne.s32.totalorder %s71, %s73
      %p77 = scmp.eq.s32.totalorder %s16, 0
      %p78 = por %p76, %p77
      %p79 = scmp.ne.s32.totalorder %s71, %s73
      %p80 = scmp.eq.s32.totalorder %s21, 1
      %p81 = por %p79, %p80
      %p82 = scmp.ne.s32.totalorder %s73, %s74
      %p83 = scmp.eq.s32.totalorder %s21, 0
      %p84 = por %p82, %p83
      %p85 = scmp.ne.s32.totalorder %s73, %s74
      %p86 = scmp.eq.s32.totalorder %s22, 1
      %p87 = por %p85, %p86
      %p89 = scmp.ne.s32.totalorder %s74, %s88
      %p90 = scmp.eq.s32.totalorder %s22, 0
      %p91 = por %p89, %p90
      %s92 = ssub.s32 %s16, %s23
      %p93 = scmp.eq.s32.totalorder %s92, 0
      %s95 = sadd.s32 %s94, 1
      %s96 = scalar_select %p93, %s94, %s95
      %p99 = pneg %p93
      %p100 = scmp.eq.s32.totalorder %s16, 1
      %p101 = por %p99, %p100
      %p102 = scmp.ne.s32.totalorder %s94, %s97
      %p103 = scmp.eq.s32.totalorder %s16, 0
      %p104 = por %p102, %p103
      %p105 = scmp.ne.s32.totalorder %s94, %s97
      %p106 = scmp.eq.s32.totalorder %s21, 1
      %p107 = por %p105, %p106
      %p108 = scmp.ne.s32.totalorder %s97, %s98
      %p109 = scmp.eq.s32.totalorder %s21, 0
      %p110 = por %p108, %p109
      %p111 = scmp.ne.s32.totalorder %s97, %s98
      %p112 = scmp.eq.s32.totalorder %s22, 1
      %p113 = por %p111, %p112
      %p115 = scmp.ne.s32.totalorder %s98, %s114
      %p116 = scmp.eq.s32.totalorder %s22, 0
      %p117 = por %p115, %p116
      %p118 = scmp.le.s32.totalorder 1, %s16
      %p119 = scmp.lt.s32.totalorder %s16, 3
      %p120 = pnand %p118, %p119
      %p121 = pneg %p120
      // Predicated region
      $region9: #{tpu_custom_call.1} parent=5 // pred_check
        _
      $region10: #{tpu_custom_call.1} parent=5 // pred_check_branch
        %123 = sbr.rel (%p120) target = $region12
      $region11: #{tpu_custom_call.1} parent=5 // pred_region
        %s124 = ssub.s32 %s16, 1
        // Predicated region
        $region13: #{tpu_custom_call.1} parent=11 // pred_check
          %p125 = pneg %p63
        $region14: #{tpu_custom_call.1} parent=11 // pred_check_branch
          %127 = sbr.rel (%p125) target = $region16
        $region15: #{tpu_custom_call.1} parent=11 // pred_region
          %129 = vsyncadd [#allocation6], 0
          %s131 = sshll.u32 %s1, 4
          %s132 = int_to_ptr.hbm [resolvable:$true] %s131
          %s133 = sshll.u32 [#allocation5], 4
          %s134 = int_to_ptr.vmem [resolvable:$true] %s133
          %136 = dma.hbm_to_vmem [thread:$0]  %s132, 16, %s134, [#allocation6]
        $region16: #{tpu_custom_call.1} parent=11 // pred_fallthru
          _
        // Predicated region
        $region17: #{tpu_custom_call.1} parent=11 // pred_check
          %p137 = pneg %p84
        $region18: #{tpu_custom_call.1} parent=11 // pred_check_branch
          %139 = sbr.rel (%p137) target = $region20
        $region19: #{tpu_custom_call.1} parent=11 // pred_region
          _
        $region20: #{tpu_custom_call.1} parent=11 // pred_fallthru
          _
      $region12: #{tpu_custom_call.1} parent=5 // pred_fallthru
        _
      %p140 = scmp.lt.s32.totalorder %s16, 2
      // Predicated region
      $region21: #{tpu_custom_call.1} parent=5 // pred_check
        %p141 = pneg %p140
      $region22: #{tpu_custom_call.1} parent=5 // pred_check_branch
        %143 = sbr.rel (%p141) target = $region24
      $region23: #{tpu_custom_call.1} parent=5 // pred_region
        // Predicated region
        $region25: #{tpu_custom_call.1} parent=23 // pred_check
          %p144 = pneg %p36
        $region26: #{tpu_custom_call.1} parent=23 // pred_check_branch
          %146 = sbr.rel (%p144) target = $region28
        $region27: #{tpu_custom_call.1} parent=23 // pred_region
          %s147 = sand.u32 %s26, 1
          %s148 = scalar_lea.sflag [#allocation3], %s147
          %s149 = sand.u32 %s26, 1
          %s150 = smul.addr %s149, 8
          %s151 = scalar_lea.vmem [#allocation2], %s150
          %153 = vsyncadd %s148, 0
          %s154 = smul.addr %s16, 8
          %s155 = scalar_lea.hbm %s0, %s154
          %s157 = sshll.u32 %s155, 4
          %s158 = int_to_ptr.hbm [resolvable:$true] %s157
          %s159 = sshll.u32 %s151, 4
          %s160 = int_to_ptr.vmem [resolvable:$true] %s159
          %162 = dma.hbm_to_vmem [thread:$0]  %s158, 128, %s160, %s148
        $region28: #{tpu_custom_call.1} parent=23 // pred_fallthru
          _
      $region24: #{tpu_custom_call.1} parent=5 // pred_fallthru
        _
      %p163 = scmp.le.s32.totalorder 1, %s16
      %p164 = scmp.lt.s32.totalorder %s16, 3
      %p165 = pnand %p163, %p164
      %p166 = pneg %p165
      // Predicated region
      $region29: #{tpu_custom_call.1} parent=5 // pred_check
        _
      $region30: #{tpu_custom_call.1} parent=5 // pred_check_branch
        %168 = sbr.rel (%p165) target = $region32
      $region31: #{tpu_custom_call.1} parent=5 // pred_region
        %s169 = ssub.s32 %s16, 1
        %s170 = sand.u32 %s29, 1
        %s171 = scalar_lea.sflag [#allocation3], %s170
        %s172 = sand.u32 %s29, 1
        %s173 = smul.addr %s172, 8
        %s174 = scalar_lea.vmem [#allocation2], %s173
        // Predicated region
        $region33: #{tpu_custom_call.1} parent=31 // pred_check
          %p175 = pneg %p42
        $region34: #{tpu_custom_call.1} parent=31 // pred_check_branch
          %177 = sbr.rel (%p175) target = $region36
        $region35: #{tpu_custom_call.1} parent=31 // pred_region
          %179 = dma.done %s171, 128
        $region36: #{tpu_custom_call.1} parent=31 // pred_fallthru
          _
        // Predicated region
        $region37: #{tpu_custom_call.1} parent=31 // pred_check
          %p180 = pneg %p63
        $region38: #{tpu_custom_call.1} parent=31 // pred_check_branch
          %182 = sbr.rel (%p180) target = $region40
        $region39: #{tpu_custom_call.1} parent=31 // pred_region
          %184 = dma.done [#allocation6], 16
        $region40: #{tpu_custom_call.1} parent=31 // pred_fallthru
          _
        %s185 = sand.u32 %s29, 1
        %s186 = scalar_lea.sflag [#allocation3], %s185
        %s187 = sand.u32 %s29, 1
        %s188 = smul.addr %s187, 8
        %s189 = scalar_lea.vmem [#allocation2], %s188
        %p190 = pneg %p42
        %p191 = pneg %p39
        %p192 = pneg %p63
        %p193 = pneg %p60
        %p194 = pneg %p84
        %p195 = pneg %p81
        %p196 = pneg %p110
        %p197 = pneg %p107
        %s198 = sand.u32 %s97, 1
        %s199 = scalar_lea.sflag [#allocation4], %s198
        %s200 = sand.u32 %s97, 1
        %s201 = smul.addr %s200, 8
        %s202 = scalar_lea.vmem [#allocation7], %s201
        %v203 = vld [vmem:[%s174] sm:$0xff]
        %204 = vadd.xlane.f32.xlu0 %v203
        %v205 = vpop.xlane.xlu0 %204
        %v206 = vmul.f32 %v203, %v203
        %207 = vadd.xlane.f32.xlu0 %v206
        %v208 = vpop.xlane.xlu0 %207
        %v209 = vmul.f32 %v205, 0.0078125
        %v210 = vmul.f32 %v208, 0.0078125
        %v211 = vmul.f32 %v209, %v209
        %v212 = vsub.f32 %v210, %v211
        %v213 = vmax.f32 %v212, 0.0
        %v214 = vadd.f32 %v213, 1e-05
        %v215 = vrsqrt.pop %v214
        %v216 = vmul.f32 %v215, %v214
        %v217 = vmul.f32 %v216, %v215
        %v218 = vmul.f32 0.5, %v217
        %v219 = vsub.f32 1.5, %v218
        %v220 = vmul.f32 %v215, %v219
        %vm221 = vweird.f32 %v214
        %vm222 = vweird.f32 %v215
        %vm223 = vmor %vm221, %vm222
        %v224 = vsel %vm223, %v215, %v220
        %v225 = vsub.f32 %v203, %v209
        %v226 = vmul.f32 %v225, %v224
        %v227 = vld [vmem:[#allocation5] sm:$0x1]
        %v229 = vperm.slane %v227, 0
        %v231 = vmul.f32 %v226, %v229
        %v232 = vld [vmem:[%s2] sm:$0x1]
        %v234 = vperm.slane %v232, 0
        %v236 = vadd.f32 %v231, %v234
        %v237 = vmul.f32 %v236, %v236
        %v238 = vmul.f32 %v237, %v236
        %v239 = vmul.f32 %v238, 0.044715
        %v240 = vadd.f32 %v236, %v239
        %v241 = vmul.f32 %v240, 0.7978846
        %v242 = vmul.f32 %v236, 0.5
        %v243 = vtanh.pop %v241
        %v244 = vadd.f32 %v243, 1.0
        %v245 = vmul.f32 %v242, %v244
        %246 = vst [vmem:[%s202] sm:$0xff] %v245
        %s247 = sand.u32 %s97, 1
        %s248 = scalar_lea.sflag [#allocation4], %s247
        %s249 = sand.u32 %s97, 1
        %s250 = smul.addr %s249, 8
        %s251 = scalar_lea.vmem [#allocation7], %s250
        // Predicated region
        $region41: #{tpu_custom_call.1} parent=31 // pred_check
          %p252 = pneg %p107
        $region42: #{tpu_custom_call.1} parent=31 // pred_check_branch
          %254 = sbr.rel (%p252) target = $region44
        $region43: #{tpu_custom_call.1} parent=31 // pred_region
          %256 = vsyncadd %s248, 0
          %s257 = smul.addr %s21, 8
          %s258 = scalar_lea.hbm %s3, %s257
          %s260 = sshll.u32 %s251, 4
          %s261 = int_to_ptr.vmem [resolvable:$true] %s260
          %s262 = sshll.u32 %s258, 4
          %s263 = int_to_ptr.hbm [resolvable:$true] %s262
          %265 = dma.vmem_to_hbm [thread:$0]  %s261, 128, %s263, %s248
        $region44: #{tpu_custom_call.1} parent=31 // pred_fallthru
          _
      $region32: #{tpu_custom_call.1} parent=5 // pred_fallthru
        _
      %p266 = scmp.le.s32.totalorder 2, %s16
      // Predicated region
      $region45: #{tpu_custom_call.1} parent=5 // pred_check
        %p267 = pneg %p266
      $region46: #{tpu_custom_call.1} parent=5 // pred_check_branch
        %269 = sbr.rel (%p267) target = $region48
      $region47: #{tpu_custom_call.1} parent=5 // pred_region
        %s270 = ssub.s32 %s16, 2
        // Predicated region
        $region49: #{tpu_custom_call.1} parent=47 // pred_check
          %p271 = pneg %p113
        $region50: #{tpu_custom_call.1} parent=47 // pred_check_branch
          %273 = sbr.rel (%p271) target = $region52
        $region51: #{tpu_custom_call.1} parent=47 // pred_region
          %s274 = sand.u32 %s98, 1
          %s275 = scalar_lea.sflag [#allocation4], %s274
          %s276 = sand.u32 %s98, 1
          %s277 = smul.addr %s276, 8
          %s278 = scalar_lea.vmem [#allocation7], %s277
          %280 = dma.done %s275, 128
        $region52: #{tpu_custom_call.1} parent=47 // pred_fallthru
          _
      $region48: #{tpu_custom_call.1} parent=5 // pred_fallthru
        _
    $region6: #{tpu_custom_call.1} parent=1 // loop_footer
      %s20 = sadd.s32 1, %s16
    $region7: #{tpu_custom_call.1} parent=1 // loop_footer_branch
      %15 = sbr.rel target = $region3
    $region8: #{tpu_custom_call.1} parent=1 // loop_exit
      _
    %281 = vsyncpa [#allocation3], 1
    %s282 = scalar_lea.sflag [#allocation3], 1
    %283 = vsyncpa %s282, 1
    %284 = vsyncpa [#allocation6], 1
    %285 = vsyncpa [#allocation4], 1
    %s286 = scalar_lea.sflag [#allocation4], 1
    %287 = vsyncpa %s286, 1

</llo_original>
